<compile_context>
chip_gen: v5e
topology: v5e:2x2
jax: 0.10.0
libtpu: 0.0.40
codegen_flags: <defaults>
</compile_context>

<pallas_src>
import functools

import jax
import jax.numpy as jnp
from jax import lax
from jax.experimental import pallas as pl
from jax.experimental.pallas import tpu as pltpu

_LANE = 128


def _round_up(x, m):
    return (x + m - 1) // m * m


def _pick_chunk(total, candidates=(2048, 1024, 512, 256, 128)):
    # Largest candidate (multiple of 128) that exactly divides `total`.
    for c in candidates:
        if c <= total and total % c == 0:
            return c
    return total


def _clamp_vmem(nbytes):
    return int(min(max(nbytes, 16 << 20), 48 << 20))


def _w_specs(C, Cr, zero_map):
    # Weights/biases: constant index_map -> kept resident, no per-step re-DMA.
    return [
        pl.BlockSpec((C, Cr), zero_map),   # w1^T  (C, Cr)
        pl.BlockSpec((1, Cr), zero_map),   # b1    (1, Cr)
        pl.BlockSpec((C, Cr), zero_map),   # w2    (C, Cr)
        pl.BlockSpec((C, 1), zero_map),    # b2    (C, 1)
    ]


def _se_mlp(mean, w1t, b1r, w2m, b2c):
    """Squeeze-excite MLP on the VPU: broadcast-multiply + reduce (no MXU).

    mean: (C, 1) f32 -> returns sigmoid gate (C, 1) f32.
    """
    h = jnp.sum(w1t * mean, axis=0, keepdims=True) + b1r      # (1, Cr)
    h = jnp.maximum(h, 0.0)
    y = jnp.sum(w2m * h, axis=-1, keepdims=True) + b2c        # (C, 1)
    return jax.nn.sigmoid(y)


# ---------------------------------------------------------------------------
# Fused single-pass kernel: one whole (C, HW_pad) image per grid step.
# ---------------------------------------------------------------------------
def _ca_fused_kernel(x_ref, w1t_ref, b1_ref, w2_ref, b2_ref, o_ref,
                     *, inv_hw, chunk):
    C = x_ref.shape[1]
    hw_pad = x_ref.shape[2]
    n_chunks = hw_pad // chunk
    unroll = n_chunks <= 8

    # ---- global average pool, f32 accumulation, chunked over lanes ----
    def pool_body(i, acc):
        off = pl.multiple_of(i * chunk, _LANE)
        xc = x_ref[0, :, pl.ds(off, chunk)].astype(jnp.float32)
        return acc + jnp.sum(xc, axis=-1, keepdims=True)

    s = lax.fori_loop(0, n_chunks, pool_body,
                      jnp.zeros((C, 1), jnp.float32), unroll=unroll)
    mean = s * inv_hw                                           # (C, 1)

    # ---- squeeze-excite MLP (VPU) ----
    y = _se_mlp(mean, w1t_ref[...], b1_ref[...], w2_ref[...], b2_ref[...])

    # ---- channel-wise rescale, chunked so early stores can start ----
    def scale_body(i, carry):
        off = pl.multiple_of(i * chunk, _LANE)
        xc = x_ref[0, :, pl.ds(off, chunk)].astype(jnp.float32)
        o_ref[0, :, pl.ds(off, chunk)] = (xc * y).astype(o_ref.dtype)
        return carry

    lax.fori_loop(0, n_chunks, scale_body, 0, unroll=unroll)


# ---------------------------------------------------------------------------
# Two-pass path. Pass 1: tiled global-average-pool + MLP -> y (N, C, 1).
# ---------------------------------------------------------------------------
def _ca_pool_mlp_kernel(x_ref, w1t_ref, b1_ref, w2_ref, b2_ref, y_ref,
                        acc_ref, *, inv_hw):
    t = pl.program_id(1)

    @pl.when(t == 0)
    def _():
        acc_ref[...] = jnp.zeros_like(acc_ref)

    xc = x_ref[0].astype(jnp.float32)                          # (C, hw_tile)
    acc_ref[...] += jnp.sum(xc, axis=-1, keepdims=True)

    @pl.when(t == pl.num_programs(1) - 1)
    def _():
        mean = acc_ref[...] * inv_hw                           # (C, 1)
        y_ref[0] = _se_mlp(mean, w1t_ref[...], b1_ref[...],
                           w2_ref[...], b2_ref[...])


# Pass 2: purely elementwise rescale, tiled over (N, HW_tile), all parallel.
def _ca_scale_kernel(x_ref, y_ref, o_ref):
    y = y_ref[0]                                               # (C, 1) f32
    o_ref[0] = (x_ref[0].astype(jnp.float32) * y).astype(o_ref.dtype)


# ---------------------------------------------------------------------------
# Wrapper
# ---------------------------------------------------------------------------
def ca_layer(x_nchw, w1, b1, w2, b2, *, hw_tile=2048,
             fused_vmem_budget=40 << 20, force_two_pass=False):
    """CALayer forward.

    x_nchw: (N, C, H, W); w1: (C//8, C); b1: (C//8, 1); w2: (C, C//8); b2: (C, 1).
    Preserves x dtype (f32 or bf16); all accumulation is f32 in-kernel.
    """
    N, C, H, W = x_nchw.shape
    Cr = w1.shape[0]
    HW = H * W
    itemsize = jnp.dtype(x_nchw.dtype).itemsize
    inv_hw = 1.0 / float(HW)

    # Weights prepped for the VPU form of the two 1x1 convs (f32).
    w1t = jnp.asarray(w1, jnp.float32).T.reshape(C, Cr)        # (C, Cr)
    b1r = jnp.asarray(b1, jnp.float32).reshape(1, Cr)
    w2m = jnp.asarray(w2, jnp.float32).reshape(C, Cr)
    b2c = jnp.asarray(b2, jnp.float32).reshape(C, 1)
    w_bytes = (w1t.size + b1r.size + w2m.size + b2c.size) * 4

    # Double-buffered VMEM need for a full-image block (in + out).
    hw_pad_fused = _round_up(HW, _LANE)
    fused_need = 4 * C * hw_pad_fused * itemsize + 2 * w_bytes
    use_fused = (not force_two_pass) and (fused_need <= fused_vmem_budget)

    if use_fused:
        x = x_nchw.reshape(N, C, HW)
        if hw_pad_fused != HW:
            x = jnp.pad(x, ((0, 0), (0, 0), (0, hw_pad_fused - HW)))
        chunk = _pick_chunk(hw_pad_fused)
        zero_map = lambda n: (0, 0)
        out = pl.pallas_call(
            functools.partial(_ca_fused_kernel, inv_hw=inv_hw, chunk=chunk),
            out_shape=jax.ShapeDtypeStruct((N, C, hw_pad_fused), x.dtype),
            grid_spec=pltpu.PrefetchScalarGridSpec(
                num_scalar_prefetch=0,
                grid=(N,),
                in_specs=[pl.BlockSpec((1, C, hw_pad_fused),
                                       lambda n: (n, 0, 0))]
                + _w_specs(C, Cr, zero_map),
                out_specs=pl.BlockSpec((1, C, hw_pad_fused),
                                       lambda n: (n, 0, 0)),
            ),
            compiler_params=pltpu.CompilerParams(
                dimension_semantics=("parallel",),
                vmem_limit_bytes=_clamp_vmem(fused_need + (2 << 20))),
        )(x, w1t, b1r, w2m, b2c)
        return out[:, :, :HW].reshape(N, C, H, W)

    # ---------------- two-pass (large feature maps) ----------------
    tile = max(_LANE, _round_up(min(hw_tile, _round_up(HW, _LANE)), _LANE))
    hw_pad = _round_up(HW, tile)
    T = hw_pad // tile

    x = x_nchw.reshape(N, C, HW)
    if hw_pad != HW:
        x = jnp.pad(x, ((0, 0), (0, 0), (0, hw_pad - HW)))

    zero_map2 = lambda n, t: (0, 0)

    # Pass 1: reduce + MLP -> y (N, C, 1) f32.
    p1_need = 2 * C * tile * itemsize + 2 * w_bytes + (2 << 20)
    y = pl.pallas_call(
        functools.partial(_ca_pool_mlp_kernel, inv_hw=inv_hw),
        out_shape=jax.ShapeDtypeStruct((N, C, 1), jnp.float32),
        grid_spec=pltpu.PrefetchScalarGridSpec(
            num_scalar_prefetch=0,
            grid=(N, T),
            in_specs=[pl.BlockSpec((1, C, tile), lambda n, t: (n, 0, t))]
            + _w_specs(C, Cr, zero_map2),
            out_specs=pl.BlockSpec((1, C, 1), lambda n, t: (n, 0, 0)),
            scratch_shapes=[pltpu.VMEM((C, 1), jnp.float32)],
        ),
        compiler_params=pltpu.CompilerParams(
            dimension_semantics=("parallel", "arbitrary"),
            vmem_limit_bytes=_clamp_vmem(p1_need)),
    )(x, w1t, b1r, w2m, b2c)

    # Pass 2: elementwise scale, both grid axes parallel (megacore + pipeline).
    p2_need = 4 * C * tile * itemsize + (2 << 20)
    out = pl.pallas_call(
        _ca_scale_kernel,
        out_shape=jax.ShapeDtypeStruct((N, C, hw_pad), x.dtype),
        grid_spec=pltpu.PrefetchScalarGridSpec(
            num_scalar_prefetch=0,
            grid=(N, T),
            in_specs=[pl.BlockSpec((1, C, tile), lambda n, t: (n, 0, t)),
                      pl.BlockSpec((1, C, 1), lambda n, t: (n, 0, 0))],
            out_specs=pl.BlockSpec((1, C, tile), lambda n, t: (n, 0, t)),
        ),
        compiler_params=pltpu.CompilerParams(
            dimension_semantics=("parallel", "parallel"),
            vmem_limit_bytes=_clamp_vmem(p2_need)),
    )(x, y)

    return out[:, :, :HW].reshape(N, C, H, W)


def ca_layer_ref(x, w1, b1, w2, b2):
    # Pure-JAX reference mirroring the PyTorch forward (f32 math).
    xf = x.astype(jnp.float32)
    y = jnp.mean(xf, axis=(2, 3), keepdims=True)               # (N, C, 1, 1)
    y = jnp.einsum('oc,ncij->noij', w1, y) + b1.reshape(1, -1, 1, 1)
    y = jnp.maximum(y, 0.0)
    y = jnp.einsum('oc,ncij->noij', w2, y) + b2.reshape(1, -1, 1, 1)
    y = jax.nn.sigmoid(y)
    return (xf * y).astype(x.dtype)


if __name__ == "__main__":
    key = jax.random.PRNGKey(0)
    N, C, H, W = 2, 32, 16, 16     # channel must be divisible by 8 (C//8 = 4)
    Cr = C // 8

    kx, k1, k2, k3, k4 = jax.random.split(key, 5)
    x = jax.random.normal(kx, (N, C, H, W), dtype=jnp.float32)
    w1 = jax.random.normal(k1, (Cr, C), dtype=jnp.float32) * 0.1  # Conv2d(C, C//8, 1)
    b1 = jax.random.normal(k2, (Cr, 1), dtype=jnp.float32) * 0.1
    w2 = jax.random.normal(k3, (C, Cr), dtype=jnp.float32) * 0.1  # Conv2d(C//8, C, 1)
    b2 = jax.random.normal(k4, (C, 1), dtype=jnp.float32) * 0.1

    ref = ca_layer_ref(x, w1, b1, w2, b2)

    # 1) fused single-pass path (small image, fits VMEM budget).
    out = jax.block_until_ready(ca_layer(x, w1, b1, w2, b2))
    assert out.shape == (N, C, H, W)
    assert jnp.allclose(out, ref, atol=1e-5, rtol=1e-5)

    # 2) two-pass path (reduce+MLP then tiled scale) with lane padding
    #    (HW=400 not a multiple of 128) and multi-tile accumulation.
    H2, W2 = 20, 20
    x2 = jax.random.normal(kx, (N, C, H2, W2), dtype=jnp.float32)
    ref2 = ca_layer_ref(x2, w1, b1, w2, b2)
    out2 = jax.block_until_ready(
        ca_layer(x2, w1, b1, w2, b2, hw_tile=128, force_two_pass=True))
    assert out2.shape == (N, C, H2, W2)
    assert jnp.allclose(out2, ref2, atol=1e-5, rtol=1e-5)

    # 3) bf16 I/O (halves HBM traffic); accumulation stays f32 in-kernel.
    xb = x.astype(jnp.bfloat16)
    refb = ca_layer_ref(xb, w1, b1, w2, b2).astype(jnp.float32)
    outb = jax.block_until_ready(ca_layer(xb, w1, b1, w2, b2)).astype(jnp.float32)
    assert jnp.allclose(outb, refb, atol=2e-2, rtol=2e-2)

    print("KERNEL_OK")
</pallas_src>

<mosaic_0001>
module attributes {stable_mosaic.version = 11 : i64} {
  func.func @_ca_fused_kernel(%arg0: i32, %arg1: memref<1x32x256xf32, #tpu.memory_space<vmem>>, %arg2: memref<32x4xf32, #tpu.memory_space<vmem>>, %arg3: memref<1x4xf32, #tpu.memory_space<vmem>>, %arg4: memref<32x4xf32, #tpu.memory_space<vmem>>, %arg5: memref<32x1xf32, #tpu.memory_space<vmem>>, %arg6: memref<1x32x256xf32, #tpu.memory_space<vmem>>) attributes {dimension_semantics = [#tpu.dimension_semantics<parallel>], iteration_bounds = array<i64: 2>, scalar_prefetch = 0 : i64, scratch_operands = 0 : i64, tpu.core_type = #tpu.core_type<tc>, window_params = [{transform_indices = @transform_0, window_bounds = array<i64: 1, 32, 256>}, {pipeline_mode = #tpu.pipeline_mode<synchronous>, transform_indices = @transform_1, window_bounds = array<i64: 32, 4>}, {pipeline_mode = #tpu.pipeline_mode<synchronous>, transform_indices = @transform_2, window_bounds = array<i64: 1, 4>}, {pipeline_mode = #tpu.pipeline_mode<synchronous>, transform_indices = @transform_3, window_bounds = array<i64: 32, 4>}, {pipeline_mode = #tpu.pipeline_mode<synchronous>, transform_indices = @transform_4, window_bounds = array<i64: 32, 1>}, {transform_indices = @transform_5, window_bounds = array<i64: 1, 32, 256>}]} {
    %cst = arith.constant 0.000000e+00 : f32
    %0 = vector.broadcast %cst : f32 to vector<32x1xf32>
    %c0_i32 = arith.constant 0 : i32
    %c256_i32 = arith.constant 256 : i32
    %1 = arith.muli %c0_i32, %c256_i32 : i32
    %2 = tpu.assume_multiple %1, 128 : i32
    %c0 = arith.constant 0 : index
    %c0_0 = arith.constant 0 : index
    %3 = arith.index_cast %2 : i32 to index
    %4 = vector.load %arg1[%c0, %c0_0, %3] : memref<1x32x256xf32, #tpu.memory_space<vmem>>, vector<1x32x256xf32>
    %5 = vector.shape_cast %4 : vector<1x32x256xf32> to vector<32x256xf32>
    %cst_1 = arith.constant dense<0.000000e+00> : vector<32xf32>
    %6 = vector.multi_reduction <add>, %5, %cst_1 [1] : vector<32x256xf32> to vector<32xf32>
    %7 = vector.shape_cast %6 : vector<32xf32> to vector<32x1xf32>
    %8 = arith.addf %0, %7 : vector<32x1xf32>
    %c1_i32 = arith.constant 1 : i32
    %cst_2 = arith.constant 3.906250e-03 : f32
    %9 = vector.broadcast %cst_2 : f32 to vector<32x1xf32>
    %10 = arith.mulf %8, %9 : vector<32x1xf32>
    %c0_3 = arith.constant 0 : index
    %c0_4 = arith.constant 0 : index
    %11 = vector.load %arg2[%c0_3, %c0_4] : memref<32x4xf32, #tpu.memory_space<vmem>>, vector<32x4xf32>
    %c0_5 = arith.constant 0 : index
    %c0_6 = arith.constant 0 : index
    %12 = vector.load %arg3[%c0_5, %c0_6] : memref<1x4xf32, #tpu.memory_space<vmem>>, vector<1x4xf32>
    %c0_7 = arith.constant 0 : index
    %c0_8 = arith.constant 0 : index
    %13 = vector.load %arg4[%c0_7, %c0_8] : memref<32x4xf32, #tpu.memory_space<vmem>>, vector<32x4xf32>
    %c0_9 = arith.constant 0 : index
    %c0_10 = arith.constant 0 : index
    %14 = vector.load %arg5[%c0_9, %c0_10] : memref<32x1xf32, #tpu.memory_space<vmem>>, vector<32x1xf32>
    %15 = vector.broadcast %10 : vector<32x1xf32> to vector<32x4xf32>
    %16 = arith.mulf %11, %15 : vector<32x4xf32>
    %cst_11 = arith.constant dense<0.000000e+00> : vector<4xf32>
    %17 = vector.multi_reduction <add>, %16, %cst_11 [0] : vector<32x4xf32> to vector<4xf32>
    %18 = vector.shape_cast %17 : vector<4xf32> to vector<1x4xf32>
    %19 = arith.addf %18, %12 : vector<1x4xf32>
    %cst_12 = arith.constant 0.000000e+00 : f32
    %20 = vector.broadcast %cst_12 : f32 to vector<1x4xf32>
    %21 = arith.maximumf %19, %20 : vector<1x4xf32>
    %22 = vector.broadcast %21 : vector<1x4xf32> to vector<32x4xf32>
    %23 = arith.mulf %13, %22 : vector<32x4xf32>
    %cst_13 = arith.constant dense<0.000000e+00> : vector<32xf32>
    %24 = vector.multi_reduction <add>, %23, %cst_13 [1] : vector<32x4xf32> to vector<32xf32>
    %25 = vector.shape_cast %24 : vector<32xf32> to vector<32x1xf32>
    %26 = arith.addf %25, %14 : vector<32x1xf32>
    %27 = arith.negf %26 : vector<32x1xf32>
    %28 = math.exp %27 : vector<32x1xf32>
    %cst_14 = arith.constant 1.000000e+00 : f32
    %29 = vector.broadcast %cst_14 : f32 to vector<32x1xf32>
    %30 = arith.addf %29, %28 : vector<32x1xf32>
    %31 = arith.divf %29, %30 : vector<32x1xf32>
    %c0_i32_15 = arith.constant 0 : i32
    %c256_i32_16 = arith.constant 256 : i32
    %32 = arith.muli %c0_i32_15, %c256_i32_16 : i32
    %33 = tpu.assume_multiple %32, 128 : i32
    %c0_17 = arith.constant 0 : index
    %c0_18 = arith.constant 0 : index
    %34 = arith.index_cast %33 : i32 to index
    %35 = vector.load %arg1[%c0_17, %c0_18, %34] : memref<1x32x256xf32, #tpu.memory_space<vmem>>, vector<1x32x256xf32>
    %36 = vector.shape_cast %35 : vector<1x32x256xf32> to vector<32x256xf32>
    %37 = vector.broadcast %31 : vector<32x1xf32> to vector<32x256xf32>
    %38 = arith.mulf %36, %37 : vector<32x256xf32>
    %c0_19 = arith.constant 0 : index
    %c0_20 = arith.constant 0 : index
    %39 = arith.index_cast %33 : i32 to index
    %40 = vector.load %arg6[%c0_19, %c0_20, %39] : memref<1x32x256xf32, #tpu.memory_space<vmem>>, vector<1x32x256xf32>
    %41 = vector.shape_cast %40 : vector<1x32x256xf32> to vector<32x256xf32>
    %42 = vector.shape_cast %38 : vector<32x256xf32> to vector<1x32x256xf32>
    tpu.vector_store %arg6[%c0_19, %c0_20, %39], %42 {strides = array<i32>} : memref<1x32x256xf32, #tpu.memory_space<vmem>>, vector<1x32x256xf32>,
    %c1_i32_21 = arith.constant 1 : i32
    return
  }
  func.func @transform_0(%arg0: i32) -> (i32, i32, i32) {
    %c0_i32 = arith.constant 0 : i32
    %c0_i32_0 = arith.constant 0 : i32
    %c0_i32_1 = arith.constant 0 : i32
    return %arg0, %c0_i32, %c0_i32_0 : i32, i32, i32
  }
  func.func @transform_1(%arg0: i32) -> (i32, i32) {
    %c0_i32 = arith.constant 0 : i32
    %c0_i32_0 = arith.constant 0 : i32
    %c0_i32_1 = arith.constant 0 : i32
    return %c0_i32, %c0_i32_0 : i32, i32
  }
  func.func @transform_2(%arg0: i32) -> (i32, i32) {
    %c0_i32 = arith.constant 0 : i32
    %c0_i32_0 = arith.constant 0 : i32
    %c0_i32_1 = arith.constant 0 : i32
    return %c0_i32, %c0_i32_0 : i32, i32
  }
  func.func @transform_3(%arg0: i32) -> (i32, i32) {
    %c0_i32 = arith.constant 0 : i32
    %c0_i32_0 = arith.constant 0 : i32
    %c0_i32_1 = arith.constant 0 : i32
    return %c0_i32, %c0_i32_0 : i32, i32
  }
  func.func @transform_4(%arg0: i32) -> (i32, i32) {
    %c0_i32 = arith.constant 0 : i32
    %c0_i32_0 = arith.constant 0 : i32
    %c0_i32_1 = arith.constant 0 : i32
    return %c0_i32, %c0_i32_0 : i32, i32
  }
  func.func @transform_5(%arg0: i32) -> (i32, i32, i32) {
    %c0_i32 = arith.constant 0 : i32
    %c0_i32_0 = arith.constant 0 : i32
    %c0_i32_1 = arith.constant 0 : i32
    return %arg0, %c0_i32, %c0_i32_0 : i32, i32, i32
  }
}

</mosaic_0001>

<llo_original>
// kernel: tpu_custom_call.1
$region0: #{tpu_custom_call.1}
  #allocation0 [shape = 'u32[]', space=smem, size = 0x4, offset = 0x4, fixed_abs, tag = 'smem constant byte address 0x4 - core index']
  #allocation1 [shape = 'u32[72,128]{1,0:T(1,128)}', space=vmem, size = 0x9000, scoped, tag = 'internal scratch']
  %s0 = inlined_call_operand.hbm [shape: f32[2,32,256], index: 0, kind: input, shape index: {}]
  %s1 = inlined_call_operand.vmem [shape: f32[32,4], index: 1, kind: input, shape index: {}]
  %s2 = inlined_call_operand.vmem [shape: f32[1,4], index: 2, kind: input, shape index: {}]
  %s3 = inlined_call_operand.vmem [shape: f32[32,4], index: 3, kind: input, shape index: {}]
  %s4 = inlined_call_operand.vmem [shape: f32[32,1], index: 4, kind: input, shape index: {}]
  %s5 = inlined_call_operand.hbm [shape: f32[2,32,256], index: 5, kind: output, shape index: {}]
  %s6 = sld [smem:[#allocation0]]
  $region57: #{tpu_custom_call.1} parent=0
    _
  %s8 = ssub.s32 1, %s6
  %s9 = scalar_select 0, %s8, %s6
  $region1: #{tpu_custom_call.1} parent=0
    #allocation2 [shape = 'u8[65536]{0}', space=vmem, size = 0x10000, scoped, tag = 'input window, operand 0']
    #allocation3 [shape = 's32[2]{0}', space=sflag, size = 0x8, scoped, tag = 'scoped memory for tpu_custom_call.1']
    #allocation4 [shape = 's32[2]{0}', space=sflag, size = 0x8, scoped, tag = 'scoped memory for tpu_custom_call.1']
    #allocation5 [shape = 'u8[65536]{0}', space=vmem, size = 0x10000, scoped, tag = 'output window, operand 0']
    %10 = vsyncpa [#allocation3], 0
    %s11 = scalar_lea.sflag [#allocation3], 1
    %12 = vsyncpa %s11, 0
    %13 = vsyncpa [#allocation4], 0
    %s14 = scalar_lea.sflag [#allocation4], 1
    %15 = vsyncpa %s14, 0
    loop: start=0, step=1, limit=4
    $region2: #{tpu_custom_call.1} parent=1 // loop_pre_header
      _
    $region3: #{tpu_custom_call.1} parent=1 // loop_header
      %s17 = sphi 0, %s21
      %p18 = scmp.ge.s32.totalorder %s17, 4
      %s27 = sphi 0, %s29
      %s30 = sphi 0, %s27
      %s31 = sphi 0, %s30
      %s47 = sphi 0, %s31
      %s51 = sphi 0, %s51
      %s53 = sphi 0, %s51
      %s54 = sphi 0, %s53
      %s68 = sphi 0, %s54
      %s72 = sphi 0, %s72
      %s74 = sphi 0, %s72
      %s75 = sphi 0, %s74
      %s89 = sphi 0, %s75
      %s93 = sphi 0, %s93
      %s95 = sphi 0, %s93
      %s96 = sphi 0, %s95
      %s110 = sphi 0, %s96
      %s114 = sphi 0, %s114
      %s116 = sphi 0, %s114
      %s117 = sphi 0, %s116
      %s131 = sphi 0, %s117
      %s137 = sphi 0, %s139
      %s140 = sphi 0, %s137
      %s141 = sphi 0, %s140
      %s157 = sphi 0, %s141
    $region4: #{tpu_custom_call.1} parent=1 // loop_header_branch
      %20 = sbr.rel (%p18) target = $region8
    $region5: #{tpu_custom_call.1} parent=1 // loop_body
      %s22 = ssub.s32 %s17, 1
      %s23 = ssub.s32 %s17, 2
      %s24 = sadd.s32 %s17, 1
      %s25 = ssub.s32 %s17, %s24
      %p26 = scmp.eq.s32.totalorder %s25, 0
      %s28 = sadd.s32 %s27, 1
      %s29 = scalar_select %p26, %s27, %s28
      %p32 = pneg %p26
      %p33 = scmp.eq.s32.totalorder %s17, 1
      %p34 = por %p32, %p33
      %p35 = scmp.ne.s32.totalorder %s27, %s30
      %p36 = scmp.eq.s32.totalorder %s17, 0
      %p37 = por %p35, %p36
      %p38 = scmp.ne.s32.totalorder %s27, %s30
      %p39 = scmp.eq.s32.totalorder %s22, 1
      %p40 = por %p38, %p39
      %p41 = scmp.ne.s32.totalorder %s30, %s31
      %p42 = scmp.eq.s32.totalorder %s22, 0
      %p43 = por %p41, %p42
      %p44 = scmp.ne.s32.totalorder %s30, %s31
      %p45 = scmp.eq.s32.totalorder %s23, 1
      %p46 = por %p44, %p45
      %p48 = scmp.ne.s32.totalorder %s31, %s47
      %p49 = scmp.eq.s32.totalorder %s23, 0
      %p50 = por %p48, %p49
      %s52 = sadd.s32 %s51, 1
      %p55 = scmp.eq.s32.totalorder %s17, 1
      %p56 = scmp.ne.s32.totalorder %s51, %s53
      %p57 = scmp.eq.s32.totalorder %s17, 0
      %p58 = por %p56, %p57
      %p59 = scmp.ne.s32.totalorder %s51, %s53
      %p60 = scmp.eq.s32.totalorder %s22, 1
      %p61 = por %p59, %p60
      %p62 = scmp.ne.s32.totalorder %s53, %s54
      %p63 = scmp.eq.s32.totalorder %s22, 0
      %p64 = por %p62, %p63
      %p65 = scmp.ne.s32.totalorder %s53, %s54
      %p66 = scmp.eq.s32.totalorder %s23, 1
      %p67 = por %p65, %p66
      %p69 = scmp.ne.s32.totalorder %s54, %s68
      %p70 = scmp.eq.s32.totalorder %s23, 0
      %p71 = por %p69, %p70
      %s73 = sadd.s32 %s72, 1
      %p76 = scmp.eq.s32.totalorder %s17, 1
      %p77 = scmp.ne.s32.totalorder %s72, %s74
      %p78 = scmp.eq.s32.totalorder %s17, 0
      %p79 = por %p77, %p78
      %p80 = scmp.ne.s32.totalorder %s72, %s74
      %p81 = scmp.eq.s32.totalorder %s22, 1
      %p82 = por %p80, %p81
      %p83 = scmp.ne.s32.totalorder %s74, %s75
      %p84 = scmp.eq.s32.totalorder %s22, 0
      %p85 = por %p83, %p84
      %p86 = scmp.ne.s32.totalorder %s74, %s75
      %p87 = scmp.eq.s32.totalorder %s23, 1
      %p88 = por %p86, %p87
      %p90 = scmp.ne.s32.totalorder %s75, %s89
      %p91 = scmp.eq.s32.totalorder %s23, 0
      %p92 = por %p90, %p91
      %s94 = sadd.s32 %s93, 1
      %p97 = scmp.eq.s32.totalorder %s17, 1
      %p98 = scmp.ne.s32.totalorder %s93, %s95
      %p99 = scmp.eq.s32.totalorder %s17, 0
      %p100 = por %p98, %p99
      %p101 = scmp.ne.s32.totalorder %s93, %s95
      %p102 = scmp.eq.s32.totalorder %s22, 1
      %p103 = por %p101, %p102
      %p104 = scmp.ne.s32.totalorder %s95, %s96
      %p105 = scmp.eq.s32.totalorder %s22, 0
      %p106 = por %p104, %p105
      %p107 = scmp.ne.s32.totalorder %s95, %s96
      %p108 = scmp.eq.s32.totalorder %s23, 1
      %p109 = por %p107, %p108
      %p111 = scmp.ne.s32.totalorder %s96, %s110
      %p112 = scmp.eq.s32.totalorder %s23, 0
      %p113 = por %p111, %p112
      %s115 = sadd.s32 %s114, 1
      %p118 = scmp.eq.s32.totalorder %s17, 1
      %p119 = scmp.ne.s32.totalorder %s114, %s116
      %p120 = scmp.eq.s32.totalorder %s17, 0
      %p121 = por %p119, %p120
      %p122 = scmp.ne.s32.totalorder %s114, %s116
      %p123 = scmp.eq.s32.totalorder %s22, 1
      %p124 = por %p122, %p123
      %p125 = scmp.ne.s32.totalorder %s116, %s117
      %p126 = scmp.eq.s32.totalorder %s22, 0
      %p127 = por %p125, %p126
      %p128 = scmp.ne.s32.totalorder %s116, %s117
      %p129 = scmp.eq.s32.totalorder %s23, 1
      %p130 = por %p128, %p129
      %p132 = scmp.ne.s32.totalorder %s117, %s131
      %p133 = scmp.eq.s32.totalorder %s23, 0
      %p134 = por %p132, %p133
      %s135 = ssub.s32 %s17, %s24
      %p136 = scmp.eq.s32.totalorder %s135, 0
      %s138 = sadd.s32 %s137, 1
      %s139 = scalar_select %p136, %s137, %s138
      %p142 = pneg %p136
      %p143 = scmp.eq.s32.totalorder %s17, 1
      %p144 = por %p142, %p143
      %p145 = scmp.ne.s32.totalorder %s137, %s140
      %p146 = scmp.eq.s32.totalorder %s17, 0
      %p147 = por %p145, %p146
      %p148 = scmp.ne.s32.totalorder %s137, %s140
      %p149 = scmp.eq.s32.totalorder %s22, 1
      %p150 = por %p148, %p149
      %p151 = scmp.ne.s32.totalorder %s140, %s141
      %p152 = scmp.eq.s32.totalorder %s22, 0
      %p153 = por %p151, %p152
      %p154 = scmp.ne.s32.totalorder %s140, %s141
      %p155 = scmp.eq.s32.totalorder %s23, 1
      %p156 = por %p154, %p155
      %p158 = scmp.ne.s32.totalorder %s141, %s157
      %p159 = scmp.eq.s32.totalorder %s23, 0
      %p160 = por %p158, %p159
      %p161 = scmp.le.s32.totalorder 1, %s17
      %p162 = scmp.lt.s32.totalorder %s17, 3
      %p163 = pnand %p161, %p162
      %p164 = pneg %p163
      // Predicated region
      $region9: #{tpu_custom_call.1} parent=5 // pred_check
        _
      $region10: #{tpu_custom_call.1} parent=5 // pred_check_branch
        %166 = sbr.rel (%p163) target = $region12
      $region11: #{tpu_custom_call.1} parent=5 // pred_region
        %s167 = ssub.s32 %s17, 1
        // Predicated region
        $region13: #{tpu_custom_call.1} parent=11 // pred_check
          %p168 = pneg %p64
        $region14: #{tpu_custom_call.1} parent=11 // pred_check_branch
          %170 = sbr.rel (%p168) target = $region16
        $region15: #{tpu_custom_call.1} parent=11 // pred_region
          _
        $region16: #{tpu_custom_call.1} parent=11 // pred_fallthru
          _
        // Predicated region
        $region17: #{tpu_custom_call.1} parent=11 // pred_check
          %p171 = pneg %p85
        $region18: #{tpu_custom_call.1} parent=11 // pred_check_branch
          %173 = sbr.rel (%p171) target = $region20
        $region19: #{tpu_custom_call.1} parent=11 // pred_region
          _
        $region20: #{tpu_custom_call.1} parent=11 // pred_fallthru
          _
        // Predicated region
        $region21: #{tpu_custom_call.1} parent=11 // pred_check
          %p174 = pneg %p106
        $region22: #{tpu_custom_call.1} parent=11 // pred_check_branch
          %176 = sbr.rel (%p174) target = $region24
        $region23: #{tpu_custom_call.1} parent=11 // pred_region
          _
        $region24: #{tpu_custom_call.1} parent=11 // pred_fallthru
          _
        // Predicated region
        $region25: #{tpu_custom_call.1} parent=11 // pred_check
          %p177 = pneg %p127
        $region26: #{tpu_custom_call.1} parent=11 // pred_check_branch
          %179 = sbr.rel (%p177) target = $region28
        $region27: #{tpu_custom_call.1} parent=11 // pred_region
          _
        $region28: #{tpu_custom_call.1} parent=11 // pred_fallthru
          _
      $region12: #{tpu_custom_call.1} parent=5 // pred_fallthru
        _
      %p180 = scmp.lt.s32.totalorder %s17, 2
      // Predicated region
      $region29: #{tpu_custom_call.1} parent=5 // pred_check
        %p181 = pneg %p180
      $region30: #{tpu_custom_call.1} parent=5 // pred_check_branch
        %183 = sbr.rel (%p181) target = $region32
      $region31: #{tpu_custom_call.1} parent=5 // pred_region
        // Predicated region
        $region33: #{tpu_custom_call.1} parent=31 // pred_check
          %p184 = pneg %p37
        $region34: #{tpu_custom_call.1} parent=31 // pred_check_branch
          %186 = sbr.rel (%p184) target = $region36
        $region35: #{tpu_custom_call.1} parent=31 // pred_region
          %s187 = sand.u32 %s27, 1
          %s188 = scalar_lea.sflag [#allocation3], %s187
          %s189 = sand.u32 %s27, 1
          %s190 = smul.addr %s189, 64
          %s191 = scalar_lea.vmem [#allocation2], %s190
          %193 = vsyncadd %s188, 0
          %s194 = smul.addr %s17, 8
          %s195 = smul.addr %s194, 8
          %s196 = scalar_lea.hbm %s0, %s195
          %s197 = sshll.u32 %s196, 4
          %s198 = int_to_ptr.hbm [resolvable:$true] %s197
          %s199 = sshll.u32 %s191, 4
          %s200 = int_to_ptr.vmem [resolvable:$true] %s199
          %205 = dma.hbm_to_vmem [thread:$0]  %s198, 1024, %s200, %s188, 256, 256, 16
        $region36: #{tpu_custom_call.1} parent=31 // pred_fallthru
          _
      $region32: #{tpu_custom_call.1} parent=5 // pred_fallthru
        _
      %p206 = scmp.le.s32.totalorder 1, %s17
      %p207 = scmp.lt.s32.totalorder %s17, 3
      %p208 = pnand %p206, %p207
      %p209 = pneg %p208
      // Predicated region
      $region37: #{tpu_custom_call.1} parent=5 // pred_check
        _
      $region38: #{tpu_custom_call.1} parent=5 // pred_check_branch
        %211 = sbr.rel (%p208) target = $region40
      $region39: #{tpu_custom_call.1} parent=5 // pred_region
        %s212 = ssub.s32 %s17, 1
        %s213 = sand.u32 %s30, 1
        %s214 = scalar_lea.sflag [#allocation3], %s213
        %s215 = sand.u32 %s30, 1
        %s216 = smul.addr %s215, 64
        %s217 = scalar_lea.vmem [#allocation2], %s216
        // Predicated region
        $region41: #{tpu_custom_call.1} parent=39 // pred_check
          %p218 = pneg %p43
        $region42: #{tpu_custom_call.1} parent=39 // pred_check_branch
          %220 = sbr.rel (%p218) target = $region44
        $region43: #{tpu_custom_call.1} parent=39 // pred_region
          %222 = dma.done %s214, 1024
        $region44: #{tpu_custom_call.1} parent=39 // pred_fallthru
          _
        %s223 = sand.u32 %s30, 1
        %s224 = scalar_lea.sflag [#allocation3], %s223
        %s225 = sand.u32 %s30, 1
        %s226 = smul.addr %s225, 64
        %s227 = scalar_lea.vmem [#allocation2], %s226
        %p228 = pneg %p43
        %p229 = pneg %p40
        %p230 = pneg %p64
        %p231 = pneg %p61
        %p232 = pneg %p85
        %p233 = pneg %p82
        %p234 = pneg %p106
        %p235 = pneg %p103
        %p236 = pneg %p127
        %p237 = pneg %p124
        %p238 = pneg %p153
        %p239 = pneg %p150
        %s240 = sand.u32 %s140, 1
        %s241 = scalar_lea.sflag [#allocation4], %s240
        %s242 = sand.u32 %s140, 1
        %s243 = smul.addr %s242, 64
        %s244 = scalar_lea.vmem [#allocation5], %s243
        %v245 = vld [vmem:[%s217] sm:$0xff]
        %v246 = vld [vmem:[%s217 + $0x8] sm:$0xff]
        %v247 = vld [vmem:[%s217 + $0x10] sm:$0xff]
        %v248 = vld [vmem:[%s217 + $0x18] sm:$0xff]
        %v249 = vld [vmem:[%s217 + $0x20] sm:$0xff]
        %v250 = vld [vmem:[%s217 + $0x28] sm:$0xff]
        %v251 = vld [vmem:[%s217 + $0x30] sm:$0xff]
        %v252 = vld [vmem:[%s217 + $0x38] sm:$0xff]
        %v253 = vadd.f32 %v245, %v246
        %254 = vadd.xlane.f32.xlu0 %v253
        %v255 = vpop.xlane.xlu0 %254
        %v256 = vadd.f32 %v247, %v248
        %257 = vadd.xlane.f32.xlu0 %v256
        %v258 = vpop.xlane.xlu0 %257
        %v259 = vadd.f32 %v249, %v250
        %260 = vadd.xlane.f32.xlu0 %v259
        %v261 = vpop.xlane.xlu0 %260
        %v262 = vadd.f32 %v251, %v252
        %263 = vadd.xlane.f32.xlu0 %v262
        %v264 = vpop.xlane.xlu0 %263
        %v265 = vadd.f32 %v255, 0.0
        %v266 = vadd.f32 %v258, 0.0
        %v267 = vadd.f32 %v261, 0.0
        %v268 = vadd.f32 %v264, 0.0
        %v269 = vmul.f32 %v265, 0.00390625
        %v270 = vmul.f32 %v266, 0.00390625
        %v271 = vmul.f32 %v267, 0.00390625
        %v272 = vmul.f32 %v268, 0.00390625
        %v273 = vld [vmem:[%s1] sm:$0xff]
        %v274 = vld [vmem:[%s1 + $0x8] sm:$0xff]
        %v275 = vld [vmem:[%s1 + $0x10] sm:$0xff]
        %v276 = vld [vmem:[%s1 + $0x18] sm:$0xff]
        %v277 = vld [vmem:[%s2] sm:$0x1]
        %v278 = vld [vmem:[%s3] sm:$0xff]
        %v279 = vld [vmem:[%s3 + $0x8] sm:$0xff]
        %v280 = vld [vmem:[%s3 + $0x10] sm:$0xff]
        %v281 = vld [vmem:[%s3 + $0x18] sm:$0xff]
        %v282 = vld [vmem:[%s4] sm:$0xff]
        %v283 = vld [vmem:[%s4 + $0x8] sm:$0xff]
        %v284 = vld [vmem:[%s4 + $0x10] sm:$0xff]
        %v285 = vld [vmem:[%s4 + $0x18] sm:$0xff]
        %v286 = vmul.f32 %v273, %v269
        %v287 = vmul.f32 %v274, %v270
        %v288 = vmul.f32 %v275, %v271
        %v289 = vmul.f32 %v276, %v272
        %vm290 = vcmask 31744
        %v291 = vsel %vm290, %v286, 0.0
        %v292 = vsel %vm290, %v287, 0.0
        %v293 = vadd.f32 %v291, %v292
        %v294 = vsel %vm290, %v288, 0.0
        %v295 = vadd.f32 %v293, %v294
        %v296 = vsel %vm290, %v289, 0.0
        %v297 = vadd.f32 %v295, %v296
        %v298 = vrot.slane %v297, 4
        %v299 = vadd.f32 %v297, %v298
        %v300 = vrot.slane %v299, 2
        %v301 = vadd.f32 %v299, %v300
        %v302 = vrot.slane %v301, 1
        %v303 = vadd.f32 %v301, %v302
        %v304 = vadd.f32 %v303, %v277
        %v305 = vmax.f32 %v304, 0.0
        %v306 = vperm.slane %v305, 0
        %v307 = vmul.f32 %v278, %v306
        %v308 = vmul.f32 %v279, %v306
        %v309 = vmul.f32 %v280, %v306
        %v310 = vmul.f32 %v281, %v306
        %v311 = vsel %vm290, %v307, 0.0
        %312 = vadd.xlane.f32.xlu0 %v311
        %v313 = vpop.xlane.xlu0 %312
        %v314 = vsel %vm290, %v308, 0.0
        %315 = vadd.xlane.f32.xlu0 %v314
        %v316 = vpop.xlane.xlu0 %315
        %v317 = vsel %vm290, %v309, 0.0
        %318 = vadd.xlane.f32.xlu0 %v317
        %v319 = vpop.xlane.xlu0 %318
        %v320 = vsel %vm290, %v310, 0.0
        %321 = vadd.xlane.f32.xlu0 %v320
        %v322 = vpop.xlane.xlu0 %321
        %v323 = vadd.f32 %v313, %v282
        %v324 = vadd.f32 %v316, %v283
        %v325 = vadd.f32 %v319, %v284
        %v326 = vadd.f32 %v322, %v285
        %v327 = vxor.u32 %v323, 2147483648
        %v328 = vxor.u32 %v324, 2147483648
        %v329 = vxor.u32 %v325, 2147483648
        %v330 = vxor.u32 %v326, 2147483648
        %v331 = vmul.f32 %v327, 1.442695
        %v332 = vpow.pop %v331
        %v333 = vmul.f32 %v328, 1.442695
        %v334 = vpow.pop %v333
        %v335 = vmul.f32 %v329, 1.442695
        %v336 = vpow.pop %v335
        %v337 = vmul.f32 %v330, 1.442695
        %v338 = vpow.pop %v337
        %v339 = vadd.f32 %v332, 1.0
        %v340 = vadd.f32 %v334, 1.0
        %v341 = vadd.f32 %v336, 1.0
        %v342 = vadd.f32 %v338, 1.0
        %v343 = vrcp.pop %v339
        %v344 = vmul.f32 %v339, %v343
        %v345 = vsub.f32 1.0, %v344
        %v346 = vmul.f32 %v343, %v345
        %v347 = vadd.f32 %v343, %v346
        %vm348 = vweird.f32 %v339
        %vm349 = vweird.f32 %v343
        %vm350 = vmor %vm348, %vm349
        %v351 = vsel %vm350, %v343, %v347
        %v352 = vand.u32 2147483647, %v339
        %vm353 = vcmp.eq.f32.partialorder %v352, 8.507059e+37
        %v354 = vand.u32 %v339, 2147483648
        %v355 = vor.u32 1.1754944e-38, %v354
        %v356 = vsel %vm353, %v355, %v351
        %v357 = vmul.f32 1.0, %v356
        %v358 = vrcp.pop %v340
        %v359 = vmul.f32 %v340, %v358
        %v360 = vsub.f32 1.0, %v359
        %v361 = vmul.f32 %v358, %v360
        %v362 = vadd.f32 %v358, %v361
        %vm363 = vweird.f32 %v340
        %vm364 = vweird.f32 %v358
        %vm365 = vmor %vm363, %vm364
        %v366 = vsel %vm365, %v358, %v362
        %v367 = vand.u32 2147483647, %v340
        %vm368 = vcmp.eq.f32.partialorder %v367, 8.507059e+37
        %v369 = vand.u32 %v340, 2147483648
        %v370 = vor.u32 1.1754944e-38, %v369
        %v371 = vsel %vm368, %v370, %v366
        %v372 = vmul.f32 1.0, %v371
        %v373 = vrcp.pop %v341
        %v374 = vmul.f32 %v341, %v373
        %v375 = vsub.f32 1.0, %v374
        %v376 = vmul.f32 %v373, %v375
        %v377 = vadd.f32 %v373, %v376
        %vm378 = vweird.f32 %v341
        %vm379 = vweird.f32 %v373
        %vm380 = vmor %vm378, %vm379
        %v381 = vsel %vm380, %v373, %v377
        %v382 = vand.u32 2147483647, %v341
        %vm383 = vcmp.eq.f32.partialorder %v382, 8.507059e+37
        %v384 = vand.u32 %v341, 2147483648
        %v385 = vor.u32 1.1754944e-38, %v384
        %v386 = vsel %vm383, %v385, %v381
        %v387 = vmul.f32 1.0, %v386
        %v388 = vrcp.pop %v342
        %v389 = vmul.f32 %v342, %v388
        %v390 = vsub.f32 1.0, %v389
        %v391 = vmul.f32 %v388, %v390
        %v392 = vadd.f32 %v388, %v391
        %vm393 = vweird.f32 %v342
        %vm394 = vweird.f32 %v388
        %vm395 = vmor %vm393, %vm394
        %v396 = vsel %vm395, %v388, %v392
        %v397 = vand.u32 2147483647, %v342
        %vm398 = vcmp.eq.f32.partialorder %v397, 8.507059e+37
        %v399 = vand.u32 %v342, 2147483648
        %v400 = vor.u32 1.1754944e-38, %v399
        %v401 = vsel %vm398, %v400, %v396
        %v402 = vmul.f32 1.0, %v401
        %404 = vset.pattern.permute.xlu0 0
        %405 = vperm.xlu0 %404, %v357
        %v406 = vpop.permute.xlu0 %405
        %409 = vset.pattern.permute.xlu0 0
        %410 = vperm.xlu0 %409, %v372
        %v411 = vpop.permute.xlu0 %410
        %414 = vset.pattern.permute.xlu0 0
        %415 = vperm.xlu0 %414, %v387
        %v416 = vpop.permute.xlu0 %415
        %419 = vset.pattern.permute.xlu0 0
        %420 = vperm.xlu0 %419, %v402
        %v421 = vpop.permute.xlu0 %420
        %v423 = vmul.f32 %v245, %v406
        %v424 = vmul.f32 %v246, %v406
        %v425 = vmul.f32 %v247, %v411
        %v426 = vmul.f32 %v248, %v411
        %v427 = vmul.f32 %v249, %v416
        %v428 = vmul.f32 %v250, %v416
        %v429 = vmul.f32 %v251, %v421
        %v430 = vmul.f32 %v252, %v421
        %431 = vst [vmem:[%s244] sm:$0xff] %v423
        %432 = vst [vmem:[%s244 + $0x8] sm:$0xff] %v424
        %433 = vst [vmem:[%s244 + $0x10] sm:$0xff] %v425
        %434 = vst [vmem:[%s244 + $0x18] sm:$0xff] %v426
        %435 = vst [vmem:[%s244 + $0x20] sm:$0xff] %v427
        %436 = vst [vmem:[%s244 + $0x28] sm:$0xff] %v428
        %437 = vst [vmem:[%s244 + $0x30] sm:$0xff] %v429
        %438 = vst [vmem:[%s244 + $0x38] sm:$0xff] %v430
        %s439 = sand.u32 %s140, 1
        %s440 = scalar_lea.sflag [#allocation4], %s439
        %s441 = sand.u32 %s140, 1
        %s442 = smul.addr %s441, 64
        %s443 = scalar_lea.vmem [#allocation5], %s442
        // Predicated region
        $region45: #{tpu_custom_call.1} parent=39 // pred_check
          %p444 = pneg %p150
        $region46: #{tpu_custom_call.1} parent=39 // pred_check_branch
          %446 = sbr.rel (%p444) target = $region48
        $region47: #{tpu_custom_call.1} parent=39 // pred_region
          %448 = vsyncadd %s440, 0
          %s449 = smul.addr %s22, 8
          %s450 = smul.addr %s449, 8
          %s451 = scalar_lea.hbm %s5, %s450
          %s452 = sshll.u32 %s443, 4
          %s453 = int_to_ptr.vmem [resolvable:$true] %s452
          %s454 = sshll.u32 %s451, 4
          %s455 = int_to_ptr.hbm [resolvable:$true] %s454
          %460 = dma.vmem_to_hbm [thread:$0]  %s453, 1024, %s455, %s440, 256, 256, 16
        $region48: #{tpu_custom_call.1} parent=39 // pred_fallthru
          _
      $region40: #{tpu_custom_call.1} parent=5 // pred_fallthru
        _
      %p461 = scmp.le.s32.totalorder 2, %s17
      // Predicated region
      $region49: #{tpu_custom_call.1} parent=5 // pred_check
        %p462 = pneg %p461
      $region50: #{tpu_custom_call.1} parent=5 // pred_check_branch
        %464 = sbr.rel (%p462) target = $region52
      $region51: #{tpu_custom_call.1} parent=5 // pred_region
        %s465 = ssub.s32 %s17, 2
        // Predicated region
        $region53: #{tpu_custom_call.1} parent=51 // pred_check
          %p466 = pneg %p156
        $region54: #{tpu_custom_call.1} parent=51 // pred_check_branch
          %468 = sbr.rel (%p466) target = $region56
        $region55: #{tpu_custom_call.1} parent=51 // pred_region
          %s469 = sand.u32 %s141, 1
          %s470 = scalar_lea.sflag [#allocation4], %s469
          %s471 = sand.u32 %s141, 1
          %s472 = smul.addr %s471, 64
          %s473 = scalar_lea.vmem [#allocation5], %s472
          %475 = dma.done %s470, 1024
        $region56: #{tpu_custom_call.1} parent=51 // pred_fallthru
          _
      $region52: #{tpu_custom_call.1} parent=5 // pred_fallthru
        _
    $region6: #{tpu_custom_call.1} parent=1 // loop_footer
      %s21 = sadd.s32 1, %s17
    $region7: #{tpu_custom_call.1} parent=1 // loop_footer_branch
      %16 = sbr.rel target = $region3
    $region8: #{tpu_custom_call.1} parent=1 // loop_exit
      _
    %476 = vsyncpa [#allocation3], 1
    %s477 = scalar_lea.sflag [#allocation3], 1
    %478 = vsyncpa %s477, 1
    %479 = vsyncpa [#allocation4], 1
    %s480 = scalar_lea.sflag [#allocation4], 1
    %481 = vsyncpa %s480, 1

</llo_original>
